<compile_context>
chip_gen: v6e
topology: v6e:2x2x1
jax: 0.10.0
libtpu: 0.0.40
codegen_flags: <defaults>
</compile_context>

<pallas_src>
import jax
import jax.numpy as jnp
from jax.experimental import pallas as pl
from jax.experimental.pallas import tpu as pltpu


def _locked_dropout_kernel(x_ref, m_ref, o_ref):
    # x_ref: (bB, tT, H), m_ref: (bB, 1, H) -> VPU broadcast-multiply over tT.
    o_ref[...] = x_ref[...] * m_ref[...]


def _choose_tiles(B, T, H, itemsize, target_bytes=4 * 1024 * 1024):
    """Pick (bB, tT) so one x block is ~target_bytes, lane-dense in H."""
    row_bytes = max(1, H * itemsize)
    # Rows along T per block.
    tT = min(T, max(1, target_bytes // row_bytes))
    if tT < T:
        # Sublane tiling: multiple of 8 when not the full extent.
        tT = max(8, (tT // 8) * 8)
    blk_bytes = tT * row_bytes
    # Merge batch rows per block when T*H is small (amortize per-step cost).
    bB = min(B, max(1, target_bytes // blk_bytes))
    return bB, tT


def locked_dropout(x, dropout, key, *, training=True):
    """x: (B, T, H).  Returns mask * x with mask ~ Bernoulli(1-p)/(1-p),
    sampled per (B, H) and shared across T.  Identity when not training."""
    if not training or dropout == 0.0:
        return x

    B, T, H = x.shape
    keep_prob = 1.0 - dropout

    # (B, 1, H) locked mask, pre-scaled and pre-cast to the input dtype so the
    # kernel inner loop is a pure load-multiply-store.
    mask = jax.random.bernoulli(key, p=keep_prob, shape=(B, 1, H))
    mask = (mask.astype(jnp.float32) * jnp.float32(1.0 / keep_prob)).astype(x.dtype)

    bB, tT = _choose_tiles(B, T, H, x.dtype.itemsize)
    grid = (pl.cdiv(B, bB), pl.cdiv(T, tT))

    return pl.pallas_call(
        _locked_dropout_kernel,
        out_shape=jax.ShapeDtypeStruct((B, T, H), x.dtype),
        grid=grid,
        in_specs=[
            pl.BlockSpec((bB, tT, H), lambda b, t: (b, t, 0)),
            pl.BlockSpec((bB, 1, H), lambda b, t: (b, 0, 0)),
        ],
        out_specs=pl.BlockSpec((bB, tT, H), lambda b, t: (b, t, 0)),
        compiler_params=pltpu.CompilerParams(
            dimension_semantics=("parallel", "parallel"),
            vmem_limit_bytes=32 * 1024 * 1024,
        ),
    )(x, mask)


if __name__ == "__main__":
    key = jax.random.PRNGKey(0)
    kx, kmask = jax.random.split(key)

    B, T, H = 2, 8, 128
    x = jax.random.normal(kx, (B, T, H), dtype=jnp.float32)

    dropout = 0.5
    out = locked_dropout(x, dropout, kmask, training=True)
    out = jax.block_until_ready(out)

    # Sanity checks on the locked-dropout semantics.
    assert out.shape == x.shape and out.dtype == x.dtype
    keep_prob = 1.0 - dropout
    ratio = out / jnp.where(jnp.abs(x) > 0, x, 1.0)       # per-element scale
    # mask must be either 0 or 1/keep_prob ...
    is_zero = jnp.isclose(ratio, 0.0, atol=1e-5)
    is_scale = jnp.isclose(ratio, 1.0 / keep_prob, atol=1e-4)
    assert bool(jnp.all(is_zero | is_scale))
    # ... and identical across the T axis (the "locked" property).
    assert bool(jnp.all(jnp.isclose(ratio, ratio[:, :1, :], atol=1e-5)))

    # Eval mode: identity.
    out_eval = jax.block_until_ready(
        locked_dropout(x, dropout, kmask, training=False)
    )
    assert bool(jnp.all(out_eval == x))

    print("KERNEL_OK")
</pallas_src>

<mosaic_0001>
module attributes {stable_mosaic.version = 11 : i64} {
  func.func @_locked_dropout_kernel(%arg0: i32, %arg1: i32, %arg2: memref<2x8x128xf32, #tpu.memory_space<vmem>>, %arg3: memref<2x1x128xf32, #tpu.memory_space<vmem>>, %arg4: memref<2x8x128xf32, #tpu.memory_space<vmem>>) attributes {dimension_semantics = [#tpu.dimension_semantics<parallel>, #tpu.dimension_semantics<parallel>], iteration_bounds = array<i64: 1, 1>, scalar_prefetch = 0 : i64, scratch_operands = 0 : i64, tpu.core_type = #tpu.core_type<tc>, window_params = [{transform_indices = @transform_0, window_bounds = array<i64: 2, 8, 128>}, {transform_indices = @transform_1, window_bounds = array<i64: 2, 1, 128>}, {transform_indices = @transform_2, window_bounds = array<i64: 2, 8, 128>}]} {
    %c0 = arith.constant 0 : index
    %c0_0 = arith.constant 0 : index
    %c0_1 = arith.constant 0 : index
    %0 = vector.load %arg2[%c0, %c0_0, %c0_1] : memref<2x8x128xf32, #tpu.memory_space<vmem>>, vector<2x8x128xf32>
    %c0_2 = arith.constant 0 : index
    %c0_3 = arith.constant 0 : index
    %c0_4 = arith.constant 0 : index
    %1 = vector.load %arg3[%c0_2, %c0_3, %c0_4] : memref<2x1x128xf32, #tpu.memory_space<vmem>>, vector<2x1x128xf32>
    %2 = vector.broadcast %1 : vector<2x1x128xf32> to vector<2x8x128xf32>
    %3 = arith.mulf %0, %2 : vector<2x8x128xf32>
    %c0_5 = arith.constant 0 : index
    %c0_6 = arith.constant 0 : index
    %c0_7 = arith.constant 0 : index
    %4 = vector.load %arg4[%c0_5, %c0_6, %c0_7] : memref<2x8x128xf32, #tpu.memory_space<vmem>>, vector<2x8x128xf32>
    tpu.vector_store %arg4[%c0_5, %c0_6, %c0_7], %3 {strides = array<i32>} : memref<2x8x128xf32, #tpu.memory_space<vmem>>, vector<2x8x128xf32>,
    return
  }
  func.func @transform_0(%arg0: i32, %arg1: i32) -> (i32, i32, i32) {
    %c0_i32 = arith.constant 0 : i32
    %c0_i32_0 = arith.constant 0 : i32
    return %arg0, %arg1, %c0_i32 : i32, i32, i32
  }
  func.func @transform_1(%arg0: i32, %arg1: i32) -> (i32, i32, i32) {
    %c0_i32 = arith.constant 0 : i32
    %c0_i32_0 = arith.constant 0 : i32
    %c0_i32_1 = arith.constant 0 : i32
    return %arg0, %c0_i32, %c0_i32_0 : i32, i32, i32
  }
  func.func @transform_2(%arg0: i32, %arg1: i32) -> (i32, i32, i32) {
    %c0_i32 = arith.constant 0 : i32
    %c0_i32_0 = arith.constant 0 : i32
    return %arg0, %arg1, %c0_i32 : i32, i32, i32
  }
}

</mosaic_0001>

<llo_original>
// kernel: tpu_custom_call.1
$region0: #{tpu_custom_call.1}
  #allocation0 [shape = 'u32[]', space=smem, size = 0x4, offset = 0x4, fixed_abs, tag = 'smem constant byte address 0x4 - core index']
  #allocation1 [shape = 'u32[144,128]{1,0:T(1,128)}', space=vmem, size = 0x12000, scoped, tag = 'internal scratch']
  %s0 = inlined_call_operand.hbm [shape: f32[2,8,128], index: 0, kind: input, shape index: {}]
  %s1 = inlined_call_operand.hbm [shape: f32[2,1,128], index: 1, kind: input, shape index: {}]
  %s2 = inlined_call_operand.hbm [shape: f32[2,8,128], index: 2, kind: output, shape index: {}]
  %s3 = sld [smem:[#allocation0]]
  $region26: #{tpu_custom_call.1} parent=0
    _
  %s5 = ssub.s32 1, %s3
  %s6 = scalar_select 0, %s5, %s3
  $region1: #{tpu_custom_call.1} parent=0
    #allocation2 [shape = 'u8[8192]{0}', space=vmem, size = 0x2000, scoped, tag = 'input window, operand 0, single buffered']
    #allocation3 [shape = 's32[1]{0}', space=sflag, size = 0x4, scoped, tag = 'scoped memory for tpu_custom_call.1']
    #allocation4 [shape = 's32[1]{0}', space=sflag, size = 0x4, scoped, tag = 'scoped memory for tpu_custom_call.1']
    #allocation5 [shape = 'u8[1024]{0}', space=vmem, size = 0x400, scoped, tag = 'input window, operand 1, single buffered']
    #allocation6 [shape = 's32[1]{0}', space=sflag, size = 0x4, scoped, tag = 'scoped memory for tpu_custom_call.1']
    #allocation7 [shape = 'u8[8192]{0}', space=vmem, size = 0x2000, scoped, tag = 'output window, operand 0, single buffered']
    %7 = vsyncpa [#allocation3], 0
    %8 = vsyncpa [#allocation6], 0
    %9 = vsyncpa [#allocation4], 0
    // Predicated region
    $region2: #{tpu_custom_call.1} parent=1 // pred_check
      _
    $region3: #{tpu_custom_call.1} parent=1 // pred_check_branch
      %11 = sbr.rel (0) target = $region5
    $region4: #{tpu_custom_call.1} parent=1 // pred_region
      %s13 = ssub.s32 256, 256
      %14 = vsyncadd [#allocation3], %s13
      %s15 = sshll.u32 [#allocation2], 4
      %s16 = int_to_ptr.vmem [resolvable:$true] %s15
      %21 = dma.hbm_to_vmem [thread:$0]  %s0, 256, %s16, [#allocation3], 128, 128, 8
    $region5: #{tpu_custom_call.1} parent=1 // pred_fallthru
      _
    // Predicated region
    $region6: #{tpu_custom_call.1} parent=1 // pred_check
      _
    $region7: #{tpu_custom_call.1} parent=1 // pred_check_branch
      %23 = sbr.rel (0) target = $region9
    $region8: #{tpu_custom_call.1} parent=1 // pred_region
      %s25 = ssub.s32 32, 32
      %26 = vsyncadd [#allocation6], %s25
      %s27 = sshll.u32 [#allocation5], 4
      %s28 = int_to_ptr.vmem [resolvable:$true] %s27
      %33 = dma.hbm_to_vmem [thread:$0]  %s1, 32, %s28, [#allocation6], 16, 16, 1
    $region9: #{tpu_custom_call.1} parent=1 // pred_fallthru
      _
    // Predicated region
    $region10: #{tpu_custom_call.1} parent=1 // pred_check
      _
    $region11: #{tpu_custom_call.1} parent=1 // pred_check_branch
      %35 = sbr.rel (0) target = $region13
    $region12: #{tpu_custom_call.1} parent=1 // pred_region
      %36 = dma.done [#allocation3], 256
    $region13: #{tpu_custom_call.1} parent=1 // pred_fallthru
      _
    // Predicated region
    $region14: #{tpu_custom_call.1} parent=1 // pred_check
      _
    $region15: #{tpu_custom_call.1} parent=1 // pred_check_branch
      %38 = sbr.rel (0) target = $region17
    $region16: #{tpu_custom_call.1} parent=1 // pred_region
      %39 = dma.done [#allocation6], 32
    $region17: #{tpu_custom_call.1} parent=1 // pred_fallthru
      _
    %v40 = vld [vmem:[#allocation2] sm:$0xff]
    %v41 = vld [vmem:[#allocation2 + $0x8] sm:$0xff]
    %v42 = vld [vmem:[#allocation5] sm:$0x1]
    %v43 = vld [vmem:[#allocation5 + $0x1] sm:$0x1]
    %v46 = vlaneseq
    %v47 = vshrl.u32 %v46, 7
    %v48 = vsub.s32 0, %v47
    %v49 = vrot.slane %v42, %v48
    %v50 = vlaneseq
    %v51 = vshrl.u32 %v50, 7
    %v52 = vsub.s32 0, %v51
    %v53 = vrot.slane %v43, %v52
    %v56 = vmul.f32 %v40, %v49
    %v57 = vmul.f32 %v41, %v53
    %58 = vst [vmem:[#allocation7] sm:$0xff] %v56
    %59 = vst [vmem:[#allocation7 + $0x8] sm:$0xff] %v57
    // Predicated region
    $region18: #{tpu_custom_call.1} parent=1 // pred_check
      _
    $region19: #{tpu_custom_call.1} parent=1 // pred_check_branch
      %61 = sbr.rel (0) target = $region21
    $region20: #{tpu_custom_call.1} parent=1 // pred_region
      %s63 = ssub.s32 256, 256
      %64 = vsyncadd [#allocation4], %s63
      %s65 = sshll.u32 [#allocation7], 4
      %s66 = int_to_ptr.vmem [resolvable:$true] %s65
      %71 = dma.vmem_to_hbm [thread:$0]  %s66, 256, %s2, [#allocation4], 128, 128, 8
    $region21: #{tpu_custom_call.1} parent=1 // pred_fallthru
      _
    // Predicated region
    $region22: #{tpu_custom_call.1} parent=1 // pred_check
      _
    $region23: #{tpu_custom_call.1} parent=1 // pred_check_branch
      %73 = sbr.rel (0) target = $region25
    $region24: #{tpu_custom_call.1} parent=1 // pred_region
      %74 = dma.done [#allocation4], 256
    $region25: #{tpu_custom_call.1} parent=1 // pred_fallthru
      _
    %75 = vsyncpa [#allocation3], 1
    %76 = vsyncpa [#allocation6], 1
    %77 = vsyncpa [#allocation4], 1

</llo_original>
